<compile_context>
chip_gen: v5e
topology: v5e:2x2
jax: 0.10.0
libtpu: 0.0.40
codegen_flags: <defaults>
</compile_context>

<pallas_src>
import functools

import jax
import jax.numpy as jnp
from jax.experimental import pallas as pl
from jax.experimental.pallas import tpu as pltpu

_LANE = 128
_MAX_BLOCK_ROWS = 2048            # 2048 x 128 x 4B = 1 MiB f32 per input block
_VMEM_LIMIT = 32 * 1024 * 1024    # explicit cap: safe on v5e/v6e (128 MiB) and v7x (64 MiB)


def _round_up(x, m):
    return ((x + m - 1) // m) * m


# ----------------------------------------------------------------------------
# Kernels: per-chunk partial sum of squares on a sublane-dense (rows, 128) view.
# Each grid step writes one lane-dense (8, 128) partial tile (row 0 holds the
# per-lane partial sums, rows 1-7 are zero); the wrapper sums all partials.
# ----------------------------------------------------------------------------
def _sumsq_const_kernel(x_ref, out_ref, *, const, n_valid):
    br, lane = x_ref.shape
    i = pl.program_id(0)
    row = jax.lax.broadcasted_iota(jnp.int32, (br, lane), 0) + i * br
    col = jax.lax.broadcasted_iota(jnp.int32, (br, lane), 1)
    mask = (row * lane + col) < n_valid            # masks lane-pad tail + OOB partial block
    v = x_ref[...].astype(jnp.float32)             # cast per-tile (bf16 stays bf16 in HBM)
    if const != 0.0:                               # target=None path: (x - 1)^2, no ones tensor
        v = v - jnp.float32(const)
    v = jnp.where(mask, v, 0.0)
    part = jnp.sum(v * v, axis=0, keepdims=True)   # (1, lane) cross-sublane reduce
    row8 = jax.lax.broadcasted_iota(jnp.int32, (8, lane), 0)
    out_ref[...] = jnp.where(row8 == 0, part, 0.0)


def _sumsq_diff_kernel(x_ref, t_ref, out_ref, *, n_valid):
    br, lane = x_ref.shape
    i = pl.program_id(0)
    row = jax.lax.broadcasted_iota(jnp.int32, (br, lane), 0) + i * br
    col = jax.lax.broadcasted_iota(jnp.int32, (br, lane), 1)
    mask = (row * lane + col) < n_valid
    v = x_ref[...].astype(jnp.float32) - t_ref[...].astype(jnp.float32)
    v = jnp.where(mask, v, 0.0)
    part = jnp.sum(v * v, axis=0, keepdims=True)
    row8 = jax.lax.broadcasted_iota(jnp.int32, (8, lane), 0)
    out_ref[...] = jnp.where(row8 == 0, part, 0.0)


# ----------------------------------------------------------------------------
# Wrappers
# ----------------------------------------------------------------------------
def _to_rows(x, lane=_LANE):
    """Flatten (keeping dtype) and view as (rows, lane); only the tail (<lane elems) is padded."""
    flat = jnp.ravel(x)
    n = flat.shape[0]
    pad = (-n) % lane
    if pad:
        flat = jnp.pad(flat, (0, pad))
    return flat.reshape(-1, lane), n


def _partial_sumsq_call(x2d, n_valid, *, const=0.0, t2d=None, block_rows=None):
    """Tiled sum-of-squares; returns (grid*8, 128) f32 lane-dense partial sums."""
    rows = x2d.shape[0]
    if block_rows is None:
        block_rows = min(_MAX_BLOCK_ROWS, _round_up(rows, 8))
    grid = pl.cdiv(rows, block_rows)
    in_spec = pl.BlockSpec((block_rows, _LANE), lambda i: (i, 0))
    out_spec = pl.BlockSpec((8, _LANE), lambda i: (i, 0))
    out_shape = jax.ShapeDtypeStruct((grid * 8, _LANE), jnp.float32)
    cparams = pltpu.CompilerParams(
        dimension_semantics=("parallel",), vmem_limit_bytes=_VMEM_LIMIT)
    if t2d is None:
        kernel = functools.partial(_sumsq_const_kernel, const=const, n_valid=n_valid)
        return pl.pallas_call(
            kernel, out_shape=out_shape, grid=(grid,),
            in_specs=[in_spec], out_specs=out_spec,
            compiler_params=cparams)(x2d)
    kernel = functools.partial(_sumsq_diff_kernel, n_valid=n_valid)
    return pl.pallas_call(
        kernel, out_shape=out_shape, grid=(grid,),
        in_specs=[in_spec, in_spec], out_specs=out_spec,
        compiler_params=cparams)(x2d, t2d)


@functools.partial(jax.jit, static_argnames=("weight_decay",))
def saur_loss(pos_scores, neg_scores, target=None, params=(), weight_decay=0.0):
    pos2d, n_pos = _to_rows(pos_scores)
    neg2d, n_neg = _to_rows(neg_scores)

    # Guard divide-by-zero for empty score tensors (contribution defined as 0).
    if n_pos == 0:
        pos_loss = jnp.float32(0.0)
    elif target is None:
        pos_loss = jnp.sum(_partial_sumsq_call(pos2d, n_pos, const=1.0)) / n_pos
    else:
        tgt2d, _ = _to_rows(target)
        pos_loss = jnp.sum(_partial_sumsq_call(pos2d, n_pos, t2d=tgt2d)) / n_pos

    if n_neg == 0:
        neg_loss = jnp.float32(0.0)
    else:
        neg_loss = jnp.sum(_partial_sumsq_call(neg2d, n_neg, const=0.0)) / n_neg

    loss = pos_loss + neg_loss

    if weight_decay > 0.0 and params:
        # Fuse all per-parameter Frobenius norms into one pallas_call: pad each
        # flattened param to a whole number of chunks, concatenate the (rows, 128)
        # views, and recover per-parameter sums from the per-chunk partials with
        # static slices (zero padding is neutral for sum-of-squares).
        sizes = [int(p.size) for p in params]
        rows_per_param = [pl.cdiv(s, _LANE) for s in sizes]
        max_rows = max([r for r in rows_per_param if r > 0], default=0)
        if max_rows == 0:
            l2_reg = jnp.float32(0.0)
        else:
            pbr = min(_MAX_BLOCK_ROWS, _round_up(max_rows, 8))   # chunk rows
            cat_dtype = jnp.result_type(*params)
            pieces, chunks = [], []
            for p, s in zip(params, sizes):
                if s == 0:
                    chunks.append(0)
                    continue
                flat = jnp.ravel(p).astype(cat_dtype)
                padded = _round_up(s, pbr * _LANE)
                if padded != s:
                    flat = jnp.pad(flat, (0, padded - s))
                pieces.append(flat.reshape(-1, _LANE))
                chunks.append(padded // (pbr * _LANE))
            cat = jnp.concatenate(pieces, axis=0) if len(pieces) > 1 else pieces[0]
            partials = _partial_sumsq_call(
                cat, cat.shape[0] * _LANE, const=0.0, block_rows=pbr)
            l2_reg = jnp.float32(0.0)
            off = 0
            for c in chunks:
                if c == 0:
                    continue
                sumsq_p = jnp.sum(partials[off * 8:(off + c) * 8])
                l2_reg = l2_reg + jnp.sqrt(sumsq_p)
                off += c
        loss = loss + jnp.float32(weight_decay) * l2_reg

    return loss


# ----------------------------------------------------------------------------
# Demo / smoke test
# ----------------------------------------------------------------------------
if __name__ == "__main__":
    key = jax.random.PRNGKey(0)
    k1, k2, k3, k4, k5, k6 = jax.random.split(key, 6)

    # Small, module-consistent shapes: 8 positive triples, 8 negatives each (x8 lanes).
    pos_scores = jax.random.uniform(k1, (8, 16), dtype=jnp.float32)
    neg_scores = jax.random.uniform(k2, (8, 64), dtype=jnp.float32)
    target = jax.random.uniform(k3, (8, 16), dtype=jnp.float32)

    # Deterministic synthetic model parameters (SAUR embeddings / attention).
    entity_embedding = 0.1 * jax.random.normal(k4, (32, 32), dtype=jnp.float32)
    relation_embedding = 0.1 * jax.random.normal(k5, (8, 32), dtype=jnp.float32)
    attention_weights = 0.1 * jax.random.normal(k6, (4, 32), dtype=jnp.float32)
    params = (entity_embedding, relation_embedding, attention_weights)

    # Case 1: explicit target + weight decay.
    loss = saur_loss(
        pos_scores, neg_scores, target=target, params=params, weight_decay=0.01
    )
    jax.block_until_ready(loss)
    ref = (
        jnp.mean((pos_scores - target) ** 2)
        + jnp.mean(neg_scores ** 2)
        + 0.01 * sum(jnp.linalg.norm(p) for p in params)
    )
    assert jnp.allclose(loss, ref, rtol=1e-5, atol=1e-5), (loss, ref)

    # Case 2: target=None (implicit ones) and no weight decay.
    loss2 = saur_loss(pos_scores, neg_scores, params=params, weight_decay=0.0)
    jax.block_until_ready(loss2)
    ref2 = jnp.mean((pos_scores - 1.0) ** 2) + jnp.mean(neg_scores ** 2)
    assert jnp.allclose(loss2, ref2, rtol=1e-5, atol=1e-5), (loss2, ref2)

    print("KERNEL_OK")
</pallas_src>

<mosaic_0001>
module attributes {stable_mosaic.version = 11 : i64} {
  func.func @_sumsq_const_kernel(%arg0: i32, %arg1: memref<8x128xf32, #tpu.memory_space<vmem>>, %arg2: memref<8x128xf32, #tpu.memory_space<vmem>>) attributes {dimension_semantics = [#tpu.dimension_semantics<parallel>], iteration_bounds = array<i64: 3>, scalar_prefetch = 0 : i64, scratch_operands = 0 : i64, tpu.core_type = #tpu.core_type<tc>, window_params = [{transform_indices = @transform_0, window_bounds = array<i64: 8, 128>}, {transform_indices = @transform_1, window_bounds = array<i64: 8, 128>}]} {
    %0 = tpu.iota {dimensions = array<i32: 0>} : vector<8x128xi32>
    %c8_i32 = arith.constant 8 : i32
    %1 = arith.muli %arg0, %c8_i32 : i32
    %2 = vector.broadcast %1 : i32 to vector<8x128xi32>
    %3 = arith.addi %0, %2 : vector<8x128xi32>
    %4 = tpu.iota {dimensions = array<i32: 1>} : vector<8x128xi32>
    %c128_i32 = arith.constant 128 : i32
    %5 = vector.broadcast %c128_i32 : i32 to vector<8x128xi32>
    %6 = arith.muli %3, %5 : vector<8x128xi32>
    %7 = arith.addi %6, %4 : vector<8x128xi32>
    %c3072_i32 = arith.constant 3072 : i32
    %8 = vector.broadcast %c3072_i32 : i32 to vector<8x128xi32>
    %9 = arith.cmpi slt, %7, %8 : vector<8x128xi32>
    %c0 = arith.constant 0 : index
    %c0_0 = arith.constant 0 : index
    %10 = vector.load %arg1[%c0, %c0_0] : memref<8x128xf32, #tpu.memory_space<vmem>>, vector<8x128xf32>
    %cst = arith.constant 0.000000e+00 : f32
    %11 = vector.broadcast %cst : f32 to vector<8x128xf32>
    %12 = arith.select %9, %10, %11 : vector<8x128xi1>, vector<8x128xf32>
    %13 = arith.mulf %12, %12 : vector<8x128xf32>
    %cst_1 = arith.constant dense<0.000000e+00> : vector<128xf32>
    %14 = vector.multi_reduction <add>, %13, %cst_1 [0] : vector<8x128xf32> to vector<128xf32>
    %15 = vector.shape_cast %14 : vector<128xf32> to vector<1x128xf32>
    %16 = tpu.iota {dimensions = array<i32: 0>} : vector<8x128xi32>
    %c0_i32 = arith.constant 0 : i32
    %17 = vector.broadcast %c0_i32 : i32 to vector<8x128xi32>
    %18 = arith.cmpi eq, %16, %17 : vector<8x128xi32>
    %cst_2 = arith.constant 0.000000e+00 : f32
    %19 = vector.shape_cast %15 : vector<1x128xf32> to vector<1x128xf32>
    %20 = vector.broadcast %19 : vector<1x128xf32> to vector<8x128xf32>
    %21 = vector.broadcast %cst_2 : f32 to vector<8x128xf32>
    %22 = arith.select %18, %20, %21 : vector<8x128xi1>, vector<8x128xf32>
    %c0_3 = arith.constant 0 : index
    %c0_4 = arith.constant 0 : index
    %23 = vector.load %arg2[%c0_3, %c0_4] : memref<8x128xf32, #tpu.memory_space<vmem>>, vector<8x128xf32>
    tpu.vector_store %arg2[%c0_3, %c0_4], %22 {strides = array<i32>} : memref<8x128xf32, #tpu.memory_space<vmem>>, vector<8x128xf32>,
    return
  }
  func.func @transform_0(%arg0: i32) -> (i32, i32) {
    %c0_i32 = arith.constant 0 : i32
    %c0_i32_0 = arith.constant 0 : i32
    return %arg0, %c0_i32 : i32, i32
  }
  func.func @transform_1(%arg0: i32) -> (i32, i32) {
    %c0_i32 = arith.constant 0 : i32
    %c0_i32_0 = arith.constant 0 : i32
    return %arg0, %c0_i32 : i32, i32
  }
}

module attributes {stable_mosaic.version = 11 : i64} {
  func.func @_sumsq_const_kernel(%arg0: i32, %arg1: memref<8x128xf32, #tpu.memory_space<vmem>>, %arg2: memref<8x128xf32, #tpu.memory_space<vmem>>) attributes {dimension_semantics = [#tpu.dimension_semantics<parallel>], iteration_bounds = array<i64: 1>, scalar_prefetch = 0 : i64, scratch_operands = 0 : i64, tpu.core_type = #tpu.core_type<tc>, window_params = [{transform_indices = @transform_0, window_bounds = array<i64: 8, 128>}, {transform_indices = @transform_1, window_bounds = array<i64: 8, 128>}]} {
    %0 = tpu.iota {dimensions = array<i32: 0>} : vector<8x128xi32>
    %c8_i32 = arith.constant 8 : i32
    %1 = arith.muli %arg0, %c8_i32 : i32
    %2 = vector.broadcast %1 : i32 to vector<8x128xi32>
    %3 = arith.addi %0, %2 : vector<8x128xi32>
    %4 = tpu.iota {dimensions = array<i32: 1>} : vector<8x128xi32>
    %c128_i32 = arith.constant 128 : i32
    %5 = vector.broadcast %c128_i32 : i32 to vector<8x128xi32>
    %6 = arith.muli %3, %5 : vector<8x128xi32>
    %7 = arith.addi %6, %4 : vector<8x128xi32>
    %c512_i32 = arith.constant 512 : i32
    %8 = vector.broadcast %c512_i32 : i32 to vector<8x128xi32>
    %9 = arith.cmpi slt, %7, %8 : vector<8x128xi32>
    %c0 = arith.constant 0 : index
    %c0_0 = arith.constant 0 : index
    %10 = vector.load %arg1[%c0, %c0_0] : memref<8x128xf32, #tpu.memory_space<vmem>>, vector<8x128xf32>
    %cst = arith.constant 0.000000e+00 : f32
    %11 = vector.broadcast %cst : f32 to vector<8x128xf32>
    %12 = arith.select %9, %10, %11 : vector<8x128xi1>, vector<8x128xf32>
    %13 = arith.mulf %12, %12 : vector<8x128xf32>
    %cst_1 = arith.constant dense<0.000000e+00> : vector<128xf32>
    %14 = vector.multi_reduction <add>, %13, %cst_1 [0] : vector<8x128xf32> to vector<128xf32>
    %15 = vector.shape_cast %14 : vector<128xf32> to vector<1x128xf32>
    %16 = tpu.iota {dimensions = array<i32: 0>} : vector<8x128xi32>
    %c0_i32 = arith.constant 0 : i32
    %17 = vector.broadcast %c0_i32 : i32 to vector<8x128xi32>
    %18 = arith.cmpi eq, %16, %17 : vector<8x128xi32>
    %cst_2 = arith.constant 0.000000e+00 : f32
    %19 = vector.shape_cast %15 : vector<1x128xf32> to vector<1x128xf32>
    %20 = vector.broadcast %19 : vector<1x128xf32> to vector<8x128xf32>
    %21 = vector.broadcast %cst_2 : f32 to vector<8x128xf32>
    %22 = arith.select %18, %20, %21 : vector<8x128xi1>, vector<8x128xf32>
    %c0_3 = arith.constant 0 : index
    %c0_4 = arith.constant 0 : index
    %23 = vector.load %arg2[%c0_3, %c0_4] : memref<8x128xf32, #tpu.memory_space<vmem>>, vector<8x128xf32>
    tpu.vector_store %arg2[%c0_3, %c0_4], %22 {strides = array<i32>} : memref<8x128xf32, #tpu.memory_space<vmem>>, vector<8x128xf32>,
    return
  }
  func.func @transform_0(%arg0: i32) -> (i32, i32) {
    %c0_i32 = arith.constant 0 : i32
    %c0_i32_0 = arith.constant 0 : i32
    return %arg0, %c0_i32 : i32, i32
  }
  func.func @transform_1(%arg0: i32) -> (i32, i32) {
    %c0_i32 = arith.constant 0 : i32
    %c0_i32_0 = arith.constant 0 : i32
    return %arg0, %c0_i32 : i32, i32
  }
}

module attributes {stable_mosaic.version = 11 : i64} {
  func.func @_sumsq_diff_kernel(%arg0: i32, %arg1: memref<8x128xf32, #tpu.memory_space<vmem>>, %arg2: memref<8x128xf32, #tpu.memory_space<vmem>>, %arg3: memref<8x128xf32, #tpu.memory_space<vmem>>) attributes {dimension_semantics = [#tpu.dimension_semantics<parallel>], iteration_bounds = array<i64: 1>, scalar_prefetch = 0 : i64, scratch_operands = 0 : i64, tpu.core_type = #tpu.core_type<tc>, window_params = [{transform_indices = @transform_0, window_bounds = array<i64: 8, 128>}, {transform_indices = @transform_1, window_bounds = array<i64: 8, 128>}, {transform_indices = @transform_2, window_bounds = array<i64: 8, 128>}]} {
    %0 = tpu.iota {dimensions = array<i32: 0>} : vector<8x128xi32>
    %c8_i32 = arith.constant 8 : i32
    %1 = arith.muli %arg0, %c8_i32 : i32
    %2 = vector.broadcast %1 : i32 to vector<8x128xi32>
    %3 = arith.addi %0, %2 : vector<8x128xi32>
    %4 = tpu.iota {dimensions = array<i32: 1>} : vector<8x128xi32>
    %c128_i32 = arith.constant 128 : i32
    %5 = vector.broadcast %c128_i32 : i32 to vector<8x128xi32>
    %6 = arith.muli %3, %5 : vector<8x128xi32>
    %7 = arith.addi %6, %4 : vector<8x128xi32>
    %c128_i32_0 = arith.constant 128 : i32
    %8 = vector.broadcast %c128_i32_0 : i32 to vector<8x128xi32>
    %9 = arith.cmpi slt, %7, %8 : vector<8x128xi32>
    %c0 = arith.constant 0 : index
    %c0_1 = arith.constant 0 : index
    %10 = vector.load %arg1[%c0, %c0_1] : memref<8x128xf32, #tpu.memory_space<vmem>>, vector<8x128xf32>
    %c0_2 = arith.constant 0 : index
    %c0_3 = arith.constant 0 : index
    %11 = vector.load %arg2[%c0_2, %c0_3] : memref<8x128xf32, #tpu.memory_space<vmem>>, vector<8x128xf32>
    %12 = arith.subf %10, %11 : vector<8x128xf32>
    %cst = arith.constant 0.000000e+00 : f32
    %13 = vector.broadcast %cst : f32 to vector<8x128xf32>
    %14 = arith.select %9, %12, %13 : vector<8x128xi1>, vector<8x128xf32>
    %15 = arith.mulf %14, %14 : vector<8x128xf32>
    %cst_4 = arith.constant dense<0.000000e+00> : vector<128xf32>
    %16 = vector.multi_reduction <add>, %15, %cst_4 [0] : vector<8x128xf32> to vector<128xf32>
    %17 = vector.shape_cast %16 : vector<128xf32> to vector<1x128xf32>
    %18 = tpu.iota {dimensions = array<i32: 0>} : vector<8x128xi32>
    %c0_i32 = arith.constant 0 : i32
    %19 = vector.broadcast %c0_i32 : i32 to vector<8x128xi32>
    %20 = arith.cmpi eq, %18, %19 : vector<8x128xi32>
    %cst_5 = arith.constant 0.000000e+00 : f32
    %21 = vector.shape_cast %17 : vector<1x128xf32> to vector<1x128xf32>
    %22 = vector.broadcast %21 : vector<1x128xf32> to vector<8x128xf32>
    %23 = vector.broadcast %cst_5 : f32 to vector<8x128xf32>
    %24 = arith.select %20, %22, %23 : vector<8x128xi1>, vector<8x128xf32>
    %c0_6 = arith.constant 0 : index
    %c0_7 = arith.constant 0 : index
    %25 = vector.load %arg3[%c0_6, %c0_7] : memref<8x128xf32, #tpu.memory_space<vmem>>, vector<8x128xf32>
    tpu.vector_store %arg3[%c0_6, %c0_7], %24 {strides = array<i32>} : memref<8x128xf32, #tpu.memory_space<vmem>>, vector<8x128xf32>,
    return
  }
  func.func @transform_0(%arg0: i32) -> (i32, i32) {
    %c0_i32 = arith.constant 0 : i32
    %c0_i32_0 = arith.constant 0 : i32
    return %arg0, %c0_i32 : i32, i32
  }
  func.func @transform_1(%arg0: i32) -> (i32, i32) {
    %c0_i32 = arith.constant 0 : i32
    %c0_i32_0 = arith.constant 0 : i32
    return %arg0, %c0_i32 : i32, i32
  }
  func.func @transform_2(%arg0: i32) -> (i32, i32) {
    %c0_i32 = arith.constant 0 : i32
    %c0_i32_0 = arith.constant 0 : i32
    return %arg0, %c0_i32 : i32, i32
  }
}

</mosaic_0001>

<llo_original>
// kernel: saur_loss.5
$region0: #{saur_loss.5}
  #allocation0 [shape = 'u32[]', space=smem, size = 0x4, offset = 0x4, fixed_abs, tag = 'smem constant byte address 0x4 - core index']
  #allocation1 [shape = 'u32[72,128]{1,0:T(1,128)}', space=vmem, size = 0x9000, scoped, tag = 'internal scratch']
  %s0 = inlined_call_operand.vmem [shape: f32[24,128], index: 0, kind: input, shape index: {}]
  %s1 = inlined_call_operand.vmem [shape: f32[24,128], index: 1, kind: output, shape index: {}]
  %s2 = sld [smem:[#allocation0]]
  $region37: #{saur_loss.5} parent=0
    _
  %s4 = ssub.s32 1, %s2
  %s5 = scalar_select 0, %s4, %s2
  loop: start=0, step=1, limit=5
  $region2: #{saur_loss.5} parent=0 // loop_pre_header
    _
  $region3: #{saur_loss.5} parent=0 // loop_header
    %s7 = sphi 0, %s11
    %p8 = scmp.ge.s32.totalorder %s7, 5
    %s17 = sphi 0, %s19
    %s20 = sphi 0, %s17
    %s21 = sphi 0, %s20
    %s37 = sphi 0, %s21
    %s43 = sphi 0, %s45
    %s46 = sphi 0, %s43
    %s47 = sphi 0, %s46
    %s63 = sphi 0, %s47
  $region4: #{saur_loss.5} parent=0 // loop_header_branch
    %10 = sbr.rel (%p8) target = $region8
  $region5: #{saur_loss.5} parent=0 // loop_body
    %s12 = ssub.s32 %s7, 1
    %s13 = ssub.s32 %s7, 2
    %s14 = sadd.s32 %s7, 1
    %s15 = ssub.s32 %s7, %s14
    %p16 = scmp.eq.s32.totalorder %s15, 0
    %s18 = sadd.s32 %s17, 1
    %s19 = scalar_select %p16, %s17, %s18
    %p22 = pneg %p16
    %p23 = scmp.eq.s32.totalorder %s7, 2
    %p24 = por %p22, %p23
    %p25 = scmp.ne.s32.totalorder %s17, %s20
    %p26 = scmp.eq.s32.totalorder %s7, 0
    %p27 = por %p25, %p26
    %p28 = scmp.ne.s32.totalorder %s17, %s20
    %p29 = scmp.eq.s32.totalorder %s12, 2
    %p30 = por %p28, %p29
    %p31 = scmp.ne.s32.totalorder %s20, %s21
    %p32 = scmp.eq.s32.totalorder %s12, 0
    %p33 = por %p31, %p32
    %p34 = scmp.ne.s32.totalorder %s20, %s21
    %p35 = scmp.eq.s32.totalorder %s13, 2
    %p36 = por %p34, %p35
    %p38 = scmp.ne.s32.totalorder %s21, %s37
    %p39 = scmp.eq.s32.totalorder %s13, 0
    %p40 = por %p38, %p39
    %s41 = ssub.s32 %s7, %s14
    %p42 = scmp.eq.s32.totalorder %s41, 0
    %s44 = sadd.s32 %s43, 1
    %s45 = scalar_select %p42, %s43, %s44
    %p48 = pneg %p42
    %p49 = scmp.eq.s32.totalorder %s7, 2
    %p50 = por %p48, %p49
    %p51 = scmp.ne.s32.totalorder %s43, %s46
    %p52 = scmp.eq.s32.totalorder %s7, 0
    %p53 = por %p51, %p52
    %p54 = scmp.ne.s32.totalorder %s43, %s46
    %p55 = scmp.eq.s32.totalorder %s12, 2
    %p56 = por %p54, %p55
    %p57 = scmp.ne.s32.totalorder %s46, %s47
    %p58 = scmp.eq.s32.totalorder %s12, 0
    %p59 = por %p57, %p58
    %p60 = scmp.ne.s32.totalorder %s46, %s47
    %p61 = scmp.eq.s32.totalorder %s13, 2
    %p62 = por %p60, %p61
    %p64 = scmp.ne.s32.totalorder %s47, %s63
    %p65 = scmp.eq.s32.totalorder %s13, 0
    %p66 = por %p64, %p65
    %p67 = scmp.le.s32.totalorder 1, %s7
    %p68 = scmp.lt.s32.totalorder %s7, 4
    %p69 = pnand %p67, %p68
    %p70 = pneg %p69
    // Predicated region
    $region9: #{saur_loss.5} parent=5 // pred_check
      _
    $region10: #{saur_loss.5} parent=5 // pred_check_branch
      %72 = sbr.rel (%p69) target = $region12
    $region11: #{saur_loss.5} parent=5 // pred_region
      %s73 = ssub.s32 %s7, 1
    $region12: #{saur_loss.5} parent=5 // pred_fallthru
      _
    %p74 = scmp.lt.s32.totalorder %s7, 3
    // Predicated region
    $region13: #{saur_loss.5} parent=5 // pred_check
      %p75 = pneg %p74
    $region14: #{saur_loss.5} parent=5 // pred_check_branch
      %77 = sbr.rel (%p75) target = $region16
    $region15: #{saur_loss.5} parent=5 // pred_region
      // Predicated region
      $region17: #{saur_loss.5} parent=15 // pred_check
        %p78 = pneg %p27
      $region18: #{saur_loss.5} parent=15 // pred_check_branch
        %80 = sbr.rel (%p78) target = $region20
      $region19: #{saur_loss.5} parent=15 // pred_region
        %p81 = scmp.lt.s32.totalorder %s7, 2
        %s82 = scalar_select %p81, %s7, 2
        %s83 = smul.addr %s82, 8
        %s84 = scalar_lea.vmem %s0, %s83
      $region20: #{saur_loss.5} parent=15 // pred_fallthru
        _
    $region16: #{saur_loss.5} parent=5 // pred_fallthru
      _
    %p85 = scmp.le.s32.totalorder 1, %s7
    %p86 = scmp.lt.s32.totalorder %s7, 4
    %p87 = pnand %p85, %p86
    %p88 = pneg %p87
    // Predicated region
    $region21: #{saur_loss.5} parent=5 // pred_check
      _
    $region22: #{saur_loss.5} parent=5 // pred_check_branch
      %90 = sbr.rel (%p87) target = $region24
    $region23: #{saur_loss.5} parent=5 // pred_region
      %s91 = ssub.s32 %s7, 1
      %p92 = scmp.lt.s32.totalorder %s12, 2
      %s93 = scalar_select %p92, %s12, 2
      %s94 = smul.addr %s93, 8
      %s95 = scalar_lea.vmem %s0, %s94
      %p96 = pneg %p33
      %p97 = pneg %p30
      %p98 = pneg %p59
      %p99 = pneg %p56
      %p100 = scmp.lt.s32.totalorder %s12, 2
      %s101 = scalar_select %p100, %s12, 2
      %s102 = smul.addr %s101, 8
      %s103 = scalar_lea.vmem %s1, %s102
      %p104 = scmp.lt.s32.totalorder %s12, 2
      %s105 = scalar_select %p104, %s12, 2
      %s106 = smul.addr %s105, 8
      %s107 = scalar_lea.vmem %s0, %s106
      %p108 = scmp.lt.s32.totalorder %s12, 2
      %s109 = scalar_select %p108, %s12, 2
      %s110 = smul.addr %s109, 8
      %s111 = scalar_lea.vmem %s1, %s110
      %v112 = vlaneseq
      %v113 = vshrl.u32 %v112, 7
      %s114 = smul.u32 %s12, 8
      %v115 = vstv %s114
      %v116 = vadd.s32 %v113, %v115
      %v117 = vlaneseq
      %v118 = vand.u32 %v117, 127
      %v119 = vmul.u32 %v116, 128
      %v120 = vadd.s32 %v119, %v118
      %vm121 = vcmp.lt.s32.totalorder %v120, 3072
      %v122 = vld [vmem:[%s107] sm:$0xff]
      %v123 = vsel %vm121, %v122, 0.0
      %v124 = vmul.f32 %v123, %v123
      %v125 = vrot.slane %v124, 4
      %v126 = vadd.f32 %v124, %v125
      %v127 = vrot.slane %v126, 2
      %v128 = vadd.f32 %v126, %v127
      %v129 = vrot.slane %v128, 1
      %v130 = vadd.f32 %v128, %v129
      %vm131 = vcmp.eq.s32.totalorder %v113, 0
      %v132 = vsel %vm131, %v130, 0.0
      %133 = vst [vmem:[%s111] sm:$0xff] %v132
      %p134 = scmp.lt.s32.totalorder %s12, 2
      %s135 = scalar_select %p134, %s12, 2
      %s136 = smul.addr %s135, 8
      %s137 = scalar_lea.vmem %s1, %s136
      // Predicated region
      $region25: #{saur_loss.5} parent=23 // pred_check
        %p138 = pneg %p56
      $region26: #{saur_loss.5} parent=23 // pred_check_branch
        %140 = sbr.rel (%p138) target = $region28
      $region27: #{saur_loss.5} parent=23 // pred_region
        _
      $region28: #{saur_loss.5} parent=23 // pred_fallthru
        _
    $region24: #{saur_loss.5} parent=5 // pred_fallthru
      _
    %p141 = scmp.le.s32.totalorder 2, %s7
    // Predicated region
    $region29: #{saur_loss.5} parent=5 // pred_check
      %p142 = pneg %p141
    $region30: #{saur_loss.5} parent=5 // pred_check_branch
      %144 = sbr.rel (%p142) target = $region32
    $region31: #{saur_loss.5} parent=5 // pred_region
      %s145 = ssub.s32 %s7, 2
      // Predicated region
      $region33: #{saur_loss.5} parent=31 // pred_check
        %p146 = pneg %p62
      $region34: #{saur_loss.5} parent=31 // pred_check_branch
        %148 = sbr.rel (%p146) target = $region36
      $region35: #{saur_loss.5} parent=31 // pred_region
        %p149 = scmp.lt.s32.totalorder %s13, 2
        %s150 = scalar_select %p149, %s13, 2
        %s151 = smul.addr %s150, 8
        %s152 = scalar_lea.vmem %s1, %s151
      $region36: #{saur_loss.5} parent=31 // pred_fallthru
        _
    $region32: #{saur_loss.5} parent=5 // pred_fallthru
      _
  $region6: #{saur_loss.5} parent=0 // loop_footer
    %s11 = sadd.s32 1, %s7
  $region7: #{saur_loss.5} parent=0 // loop_footer_branch
    %6 = sbr.rel target = $region3
  $region8: #{saur_loss.5} parent=0 // loop_exit
    _

// kernel: saur_loss.4
$region0: #{saur_loss.4}
  #allocation0 [shape = 'u32[]', space=smem, size = 0x4, offset = 0x4, fixed_abs, tag = 'smem constant byte address 0x4 - core index']
  #allocation1 [shape = 'u32[72,128]{1,0:T(1,128)}', space=vmem, size = 0x9000, scoped, tag = 'internal scratch']
  %s0 = inlined_call_operand.vmem [shape: f32[4,128], index: 0, kind: input, shape index: {}]
  %s1 = inlined_call_operand.vmem [shape: f32[8,128], index: 1, kind: output, shape index: {}]
  %s2 = sld [smem:[#allocation0]]
  $region14: #{saur_loss.4} parent=0
    _
  %s4 = ssub.s32 1, %s2
  %s5 = scalar_select 0, %s4, %s2
  // Predicated region
  $region2: #{saur_loss.4} parent=0 // pred_check
    _
  $region3: #{saur_loss.4} parent=0 // pred_check_branch
    %7 = sbr.rel (0) target = $region5
  $region4: #{saur_loss.4} parent=0 // pred_region
    _
  $region5: #{saur_loss.4} parent=0 // pred_fallthru
    _
  %v8 = vlaneseq
  %v9 = vshrl.u32 %v8, 7
  %s10 = smul.u32 0, 8
  %v11 = vstv %s10
  %v12 = vadd.s32 %v9, %v11
  %v13 = vlaneseq
  %v14 = vand.u32 %v13, 127
  %v15 = vmul.u32 %v12, 128
  %v16 = vadd.s32 %v15, %v14
  %vm17 = vcmp.lt.s32.totalorder %v16, 512
  %v18 = vld [vmem:[%s0] sm:$0xff]
  %v19 = vsel %vm17, %v18, 0.0
  %v20 = vmul.f32 %v19, %v19
  %v21 = vrot.slane %v20, 4
  %v22 = vadd.f32 %v20, %v21
  %v23 = vrot.slane %v22, 2
  %v24 = vadd.f32 %v22, %v23
  %v25 = vrot.slane %v24, 1
  %v26 = vadd.f32 %v24, %v25
  %vm27 = vcmp.eq.s32.totalorder %v9, 0
  %v28 = vsel %vm27, %v26, 0.0
  %29 = vst [vmem:[%s1] sm:$0xff] %v28
  // Predicated region
  $region6: #{saur_loss.4} parent=0 // pred_check
    _
  $region7: #{saur_loss.4} parent=0 // pred_check_branch
    %31 = sbr.rel (0) target = $region9
  $region8: #{saur_loss.4} parent=0 // pred_region
    _
  $region9: #{saur_loss.4} parent=0 // pred_fallthru
    _
  // Predicated region
  $region10: #{saur_loss.4} parent=0 // pred_check
    _
  $region11: #{saur_loss.4} parent=0 // pred_check_branch
    %33 = sbr.rel (0) target = $region13
  $region12: #{saur_loss.4} parent=0 // pred_region
    _
  $region13: #{saur_loss.4} parent=0 // pred_fallthru
    _

// kernel: saur_loss.3
$region0: #{saur_loss.3}
  #allocation0 [shape = 'u32[]', space=smem, size = 0x4, offset = 0x4, fixed_abs, tag = 'smem constant byte address 0x4 - core index']
  #allocation1 [shape = 'u32[72,128]{1,0:T(1,128)}', space=vmem, size = 0x9000, scoped, tag = 'internal scratch']
  %s0 = inlined_call_operand.vmem [shape: f32[1,128], index: 0, kind: input, shape index: {}]
  %s1 = inlined_call_operand.vmem [shape: f32[1,128], index: 1, kind: input, shape index: {}]
  %s2 = inlined_call_operand.vmem [shape: f32[8,128], index: 2, kind: output, shape index: {}]
  %s3 = sld [smem:[#allocation0]]
  $region18: #{saur_loss.3} parent=0
    _
  %s5 = ssub.s32 1, %s3
  %s6 = scalar_select 0, %s5, %s3
  // Predicated region
  $region2: #{saur_loss.3} parent=0 // pred_check
    _
  $region3: #{saur_loss.3} parent=0 // pred_check_branch
    %8 = sbr.rel (0) target = $region5
  $region4: #{saur_loss.3} parent=0 // pred_region
    _
  $region5: #{saur_loss.3} parent=0 // pred_fallthru
    _
  // Predicated region
  $region6: #{saur_loss.3} parent=0 // pred_check
    _
  $region7: #{saur_loss.3} parent=0 // pred_check_branch
    %10 = sbr.rel (0) target = $region9
  $region8: #{saur_loss.3} parent=0 // pred_region
    _
  $region9: #{saur_loss.3} parent=0 // pred_fallthru
    _
  %v11 = vlaneseq
  %v12 = vshrl.u32 %v11, 7
  %s13 = smul.u32 0, 8
  %v14 = vstv %s13
  %v15 = vadd.s32 %v12, %v14
  %v16 = vlaneseq
  %v17 = vand.u32 %v16, 127
  %v18 = vmul.u32 %v15, 128
  %v19 = vadd.s32 %v18, %v17
  %vm20 = vcmp.lt.s32.totalorder %v19, 128
  %v21 = vld [vmem:[%s0] sm:$0xff]
  %v22 = vld [vmem:[%s1] sm:$0xff]
  %v23 = vsub.f32 %v21, %v22
  %v24 = vsel %vm20, %v23, 0.0
  %v25 = vmul.f32 %v24, %v24
  %v26 = vrot.slane %v25, 4
  %v27 = vadd.f32 %v25, %v26
  %v28 = vrot.slane %v27, 2
  %v29 = vadd.f32 %v27, %v28
  %v30 = vrot.slane %v29, 1
  %v31 = vadd.f32 %v29, %v30
  %vm32 = vcmp.eq.s32.totalorder %v12, 0
  %v33 = vsel %vm32, %v31, 0.0
  %34 = vst [vmem:[%s2] sm:$0xff] %v33
  // Predicated region
  $region10: #{saur_loss.3} parent=0 // pred_check
    _
  $region11: #{saur_loss.3} parent=0 // pred_check_branch
    %36 = sbr.rel (0) target = $region13
  $region12: #{saur_loss.3} parent=0 // pred_region
    _
  $region13: #{saur_loss.3} parent=0 // pred_fallthru
    _
  // Predicated region
  $region14: #{saur_loss.3} parent=0 // pred_check
    _
  $region15: #{saur_loss.3} parent=0 // pred_check_branch
    %38 = sbr.rel (0) target = $region17
  $region16: #{saur_loss.3} parent=0 // pred_region
    _
  $region17: #{saur_loss.3} parent=0 // pred_fallthru
    _

</llo_original>
